<compile_context>
chip_gen: v6e
topology: v6e:2x2x1
jax: 0.10.0
libtpu: 0.0.40
codegen_flags: <defaults>
</compile_context>

<pallas_src>
import jax
import jax.numpy as jnp
from jax.experimental import pallas as pl
from jax.experimental.pallas import tpu as pltpu

N = 100            # distances = torch.randn(100, 2)
IN_DIM = 2
ENCODING_DIM = 32

# Packed parameter layout (rows of a single [36, 32] f32 buffer):
#   rows [0 : 2)   -> W1  (2, 32)
#   row  [2 : 3)   -> b1  (1, 32)
#   rows [3 : 35)  -> W2  (32, 32)
#   row  [35 : 36) -> b2  (1, 32)
_B1_ROW = IN_DIM
_W2_START = IN_DIM + 1
_W2_END = _W2_START + ENCODING_DIM
_PACKED_ROWS = _W2_END + 1


def distance_encoding_kernel(dist_ref, params_ref, out_ref):
    d = dist_ref[...].astype(jnp.float32)                       # [N, 2] (cast is a no-op for f32)

    # Static slices into the packed parameter buffer (zero runtime cost).
    w1_r0 = params_ref[0:1, :]                                  # [1, E]  W1 row 0
    w1_r1 = params_ref[1:2, :]                                  # [1, E]  W1 row 1
    b1 = params_ref[_B1_ROW:_B1_ROW + 1, :]                     # [1, E]
    w2 = params_ref[_W2_START:_W2_END, :]                       # [E, E]
    b2 = params_ref[_W2_END:_PACKED_ROWS, :]                    # [1, E]

    # --- Linear(2, E): degenerate K=2 -> two broadcast FMAs on the VPU -------
    e1 = d[:, 0:1] * w1_r0 + d[:, 1:2] * w1_r1 + b1             # [N, E]

    # --- ReLU -----------------------------------------------------------------
    e1 = jnp.maximum(e1, 0.0)

    # --- Linear(E, E): dense matmul on the MXU, f32 accumulation --------------
    out_ref[...] = (
        jnp.dot(e1, w2, preferred_element_type=jnp.float32) + b2
    )


def pack_params(params):
    """Concatenate W1, b1, W2, b2 into one [36, 32] f32 buffer (done once at init)."""
    return jnp.concatenate(
        [params["w1"], params["b1"], params["w2"], params["b2"]], axis=0
    ).astype(jnp.float32)


def distance_encoding(distances, packed_params):
    n = distances.shape[0]
    vmem = pl.BlockSpec(memory_space=pltpu.MemorySpace.VMEM)
    # Single ungridded call: whole problem lives in VMEM; 2 input DMAs, 1 output DMA.
    return pl.pallas_call(
        distance_encoding_kernel,
        out_shape=jax.ShapeDtypeStruct((n, ENCODING_DIM), jnp.float32),
        in_specs=[vmem, vmem],
        out_specs=vmem,
    )(distances, packed_params)


def distance_encoding_reference(distances, params):
    # Pure-JAX reference for correctness checking.
    e1 = jnp.maximum(distances @ params["w1"] + params["b1"], 0.0)
    return e1 @ params["w2"] + params["b2"]


def init_params(key):
    ks = jax.random.split(key, 4)
    scale = 0.1
    return dict(
        w1=scale * jax.random.normal(ks[0], (IN_DIM, ENCODING_DIM), jnp.float32),
        b1=scale * jax.random.normal(ks[1], (1, ENCODING_DIM), jnp.float32),
        w2=scale * jax.random.normal(ks[2], (ENCODING_DIM, ENCODING_DIM), jnp.float32),
        b2=scale * jax.random.normal(ks[3], (1, ENCODING_DIM), jnp.float32),
    )


if __name__ == "__main__":
    key = jax.random.PRNGKey(0)
    k_d, k_p = jax.random.split(key, 2)

    distances = jax.random.normal(k_d, (N, IN_DIM), jnp.float32)
    params = init_params(k_p)
    packed = pack_params(params)          # packed once at init -> 2 input DMAs per call

    fwd = jax.jit(distance_encoding)
    out = jax.block_until_ready(fwd(distances, packed))

    assert out.shape == (N, ENCODING_DIM)
    assert out.dtype == jnp.float32

    ref = distance_encoding_reference(distances, params)
    assert bool(jnp.allclose(out, ref, atol=1e-5, rtol=1e-5))

    print("KERNEL_OK")
</pallas_src>

<mosaic_0001>
module attributes {stable_mosaic.version = 11 : i64} {
  func.func @distance_encoding_kernel(%arg0: memref<100x2xf32, #tpu.memory_space<vmem>>, %arg1: memref<36x32xf32, #tpu.memory_space<vmem>>, %arg2: memref<100x32xf32, #tpu.memory_space<vmem>>) attributes {dimension_semantics = [], scalar_prefetch = 0 : i64, scratch_operands = 0 : i64, tpu.core_type = #tpu.core_type<tc>} {
    %c0 = arith.constant 0 : index
    %c0_0 = arith.constant 0 : index
    %0 = vector.load %arg0[%c0, %c0_0] : memref<100x2xf32, #tpu.memory_space<vmem>>, vector<100x2xf32>
    %c0_1 = arith.constant 0 : index
    %c0_2 = arith.constant 0 : index
    %1 = vector.load %arg1[%c0_1, %c0_2] : memref<36x32xf32, #tpu.memory_space<vmem>>, vector<1x32xf32>
    %c1 = arith.constant 1 : index
    %c0_3 = arith.constant 0 : index
    %2 = vector.load %arg1[%c1, %c0_3] : memref<36x32xf32, #tpu.memory_space<vmem>>, vector<1x32xf32>
    %c2 = arith.constant 2 : index
    %c0_4 = arith.constant 0 : index
    %3 = vector.load %arg1[%c2, %c0_4] : memref<36x32xf32, #tpu.memory_space<vmem>>, vector<1x32xf32>
    %c3 = arith.constant 3 : index
    %c0_5 = arith.constant 0 : index
    %4 = vector.load %arg1[%c3, %c0_5] : memref<36x32xf32, #tpu.memory_space<vmem>>, vector<32x32xf32>
    %c35 = arith.constant 35 : index
    %c0_6 = arith.constant 0 : index
    %5 = vector.load %arg1[%c35, %c0_6] : memref<36x32xf32, #tpu.memory_space<vmem>>, vector<1x32xf32>
    %6 = vector.extract_strided_slice %0 {offsets = [0, 0], sizes = [100, 1], strides = [1, 1]} : vector<100x2xf32> to vector<100x1xf32>
    %7 = vector.broadcast %6 : vector<100x1xf32> to vector<100x32xf32>
    %8 = vector.broadcast %1 : vector<1x32xf32> to vector<100x32xf32>
    %9 = arith.mulf %7, %8 : vector<100x32xf32>
    %10 = vector.extract_strided_slice %0 {offsets = [0, 1], sizes = [100, 1], strides = [1, 1]} : vector<100x2xf32> to vector<100x1xf32>
    %11 = vector.broadcast %10 : vector<100x1xf32> to vector<100x32xf32>
    %12 = vector.broadcast %2 : vector<1x32xf32> to vector<100x32xf32>
    %13 = arith.mulf %11, %12 : vector<100x32xf32>
    %14 = arith.addf %9, %13 : vector<100x32xf32>
    %15 = vector.broadcast %3 : vector<1x32xf32> to vector<100x32xf32>
    %16 = arith.addf %14, %15 : vector<100x32xf32>
    %cst = arith.constant 0.000000e+00 : f32
    %17 = vector.broadcast %cst : f32 to vector<100x32xf32>
    %18 = arith.maximumf %16, %17 : vector<100x32xf32>
    %cst_7 = arith.constant dense<0.000000e+00> : vector<100x32xf32>
    %19 = tpu.matmul %18, %4, %cst_7 {dimension_numbers = #tpu.dot_dimension_numbers<[1], [0], [0], [1], [0, 0, 1, 1], [], []>} : vector<100x32xf32>, vector<32x32xf32>, vector<100x32xf32> -> vector<100x32xf32>
    %20 = vector.broadcast %5 : vector<1x32xf32> to vector<100x32xf32>
    %21 = arith.addf %19, %20 : vector<100x32xf32>
    %c0_8 = arith.constant 0 : index
    %c0_9 = arith.constant 0 : index
    %22 = vector.load %arg2[%c0_8, %c0_9] : memref<100x32xf32, #tpu.memory_space<vmem>>, vector<100x32xf32>
    tpu.vector_store %arg2[%c0_8, %c0_9], %21 {strides = array<i32>} : memref<100x32xf32, #tpu.memory_space<vmem>>, vector<100x32xf32>,
    return
  }
}

</mosaic_0001>

<llo_original>
// kernel: distance_encoding.1
$region0: #{distance_encoding.1}
  #allocation0 [shape = 'u32[]', space=smem, size = 0x4, offset = 0x4, fixed_abs, tag = 'smem constant byte address 0x4 - core index']
  #allocation1 [shape = 'u32[144,128]{1,0:T(1,128)}', space=vmem, size = 0x12000, scoped, tag = 'internal scratch']
  %s0 = inlined_call_operand.vmem [shape: f32[100,2], index: 0, kind: input, shape index: {}]
  %s1 = inlined_call_operand.vmem [shape: f32[36,32], index: 1, kind: input, shape index: {}]
  %s2 = inlined_call_operand.vmem [shape: f32[100,32], index: 2, kind: output, shape index: {}]
  %s3 = sld [smem:[#allocation0]]
  $region18: #{distance_encoding.1} parent=0
    _
  %s5 = ssub.s32 1, %s3
  %s6 = scalar_select 0, %s5, %s3
  // Predicated region
  $region2: #{distance_encoding.1} parent=0 // pred_check
    _
  $region3: #{distance_encoding.1} parent=0 // pred_check_branch
    %8 = sbr.rel (0) target = $region5
  $region4: #{distance_encoding.1} parent=0 // pred_region
    _
  $region5: #{distance_encoding.1} parent=0 // pred_fallthru
    _
  // Predicated region
  $region6: #{distance_encoding.1} parent=0 // pred_check
    _
  $region7: #{distance_encoding.1} parent=0 // pred_check_branch
    %10 = sbr.rel (0) target = $region9
  $region8: #{distance_encoding.1} parent=0 // pred_region
    _
  $region9: #{distance_encoding.1} parent=0 // pred_fallthru
    _
  %v11 = vld [vmem:[%s0] sm:$0xff]
  %v12 = vld [vmem:[%s0 + $0x8] sm:$0xff]
  %v13 = vld [vmem:[%s0 + $0x10] sm:$0xff]
  %v14 = vld [vmem:[%s0 + $0x18] sm:$0xff]
  %v15 = vld [vmem:[%s0 + $0x20] sm:$0xff]
  %v16 = vld [vmem:[%s0 + $0x28] sm:$0xff]
  %v17 = vld [vmem:[%s0 + $0x30] sm:$0xff]
  %v18 = vld [vmem:[%s0 + $0x38] sm:$0xff]
  %v19 = vld [vmem:[%s0 + $0x40] sm:$0xff]
  %v20 = vld [vmem:[%s0 + $0x48] sm:$0xff]
  %v21 = vld [vmem:[%s0 + $0x50] sm:$0xff]
  %v22 = vld [vmem:[%s0 + $0x58] sm:$0xff]
  %v23 = vld [vmem:[%s0 + $0x60] sm:$0xf]
  %v24 = vld [vmem:[%s1] sm:$0x1]
  %v25 = vld [vmem:[%s1 + $0x1] sm:$0x1]
  %v26 = vld [vmem:[%s1 + $0x2] sm:$0x1]
  %v27 = vld [vmem:[%s1 + $0x3] sm:$0xff]
  %v28 = vld [vmem:[%s1 + $0xb] sm:$0xff]
  %v29 = vld [vmem:[%s1 + $0x13] sm:$0xff]
  %v30 = vld [vmem:[%s1 + $0x1b] sm:$0xff]
  %v31 = vld [vmem:[%s1 + $0x23] sm:$0x1]
  %33 = vset.pattern.permute.xlu0 0
  %34 = vperm.xlu0 %33, %v11
  %v35 = vpop.permute.xlu0 %34
  %38 = vset.pattern.permute.xlu0 0
  %39 = vperm.xlu0 %38, %v12
  %v40 = vpop.permute.xlu0 %39
  %43 = vset.pattern.permute.xlu0 0
  %44 = vperm.xlu0 %43, %v13
  %v45 = vpop.permute.xlu0 %44
  %48 = vset.pattern.permute.xlu0 0
  %49 = vperm.xlu0 %48, %v14
  %v50 = vpop.permute.xlu0 %49
  %53 = vset.pattern.permute.xlu0 0
  %54 = vperm.xlu0 %53, %v15
  %v55 = vpop.permute.xlu0 %54
  %58 = vset.pattern.permute.xlu0 0
  %59 = vperm.xlu0 %58, %v16
  %v60 = vpop.permute.xlu0 %59
  %63 = vset.pattern.permute.xlu0 0
  %64 = vperm.xlu0 %63, %v17
  %v65 = vpop.permute.xlu0 %64
  %68 = vset.pattern.permute.xlu0 0
  %69 = vperm.xlu0 %68, %v18
  %v70 = vpop.permute.xlu0 %69
  %73 = vset.pattern.permute.xlu0 0
  %74 = vperm.xlu0 %73, %v19
  %v75 = vpop.permute.xlu0 %74
  %78 = vset.pattern.permute.xlu0 0
  %79 = vperm.xlu0 %78, %v20
  %v80 = vpop.permute.xlu0 %79
  %83 = vset.pattern.permute.xlu0 0
  %84 = vperm.xlu0 %83, %v21
  %v85 = vpop.permute.xlu0 %84
  %88 = vset.pattern.permute.xlu0 0
  %89 = vperm.xlu0 %88, %v22
  %v90 = vpop.permute.xlu0 %89
  %93 = vset.pattern.permute.xlu0 0
  %94 = vperm.xlu0 %93, %v23
  %v95 = vpop.permute.xlu0 %94
  %v97 = vlaneseq
  %v98 = vshrl.u32 %v97, 7
  %v99 = vsub.s32 0, %v98
  %v100 = vrot.slane %v24, %v99
  %v101 = vmul.f32 %v35, %v100
  %v102 = vmul.f32 %v40, %v100
  %v103 = vmul.f32 %v45, %v100
  %v104 = vmul.f32 %v50, %v100
  %v105 = vmul.f32 %v55, %v100
  %v106 = vmul.f32 %v60, %v100
  %v107 = vmul.f32 %v65, %v100
  %v108 = vmul.f32 %v70, %v100
  %v109 = vmul.f32 %v75, %v100
  %v110 = vmul.f32 %v80, %v100
  %v111 = vmul.f32 %v85, %v100
  %v112 = vmul.f32 %v90, %v100
  %v113 = vmul.f32 %v95, %v100
  %114 = vset.pattern.permute.xlu0 1
  %115 = vperm.xlu0 %114, %v11
  %v116 = vpop.permute.xlu0 %115
  %118 = vset.pattern.permute.xlu0 1
  %119 = vperm.xlu0 %118, %v12
  %v120 = vpop.permute.xlu0 %119
  %122 = vset.pattern.permute.xlu0 1
  %123 = vperm.xlu0 %122, %v13
  %v124 = vpop.permute.xlu0 %123
  %126 = vset.pattern.permute.xlu0 1
  %127 = vperm.xlu0 %126, %v14
  %v128 = vpop.permute.xlu0 %127
  %130 = vset.pattern.permute.xlu0 1
  %131 = vperm.xlu0 %130, %v15
  %v132 = vpop.permute.xlu0 %131
  %134 = vset.pattern.permute.xlu0 1
  %135 = vperm.xlu0 %134, %v16
  %v136 = vpop.permute.xlu0 %135
  %138 = vset.pattern.permute.xlu0 1
  %139 = vperm.xlu0 %138, %v17
  %v140 = vpop.permute.xlu0 %139
  %142 = vset.pattern.permute.xlu0 1
  %143 = vperm.xlu0 %142, %v18
  %v144 = vpop.permute.xlu0 %143
  %146 = vset.pattern.permute.xlu0 1
  %147 = vperm.xlu0 %146, %v19
  %v148 = vpop.permute.xlu0 %147
  %150 = vset.pattern.permute.xlu0 1
  %151 = vperm.xlu0 %150, %v20
  %v152 = vpop.permute.xlu0 %151
  %154 = vset.pattern.permute.xlu0 1
  %155 = vperm.xlu0 %154, %v21
  %v156 = vpop.permute.xlu0 %155
  %158 = vset.pattern.permute.xlu0 1
  %159 = vperm.xlu0 %158, %v22
  %v160 = vpop.permute.xlu0 %159
  %162 = vset.pattern.permute.xlu0 1
  %163 = vperm.xlu0 %162, %v23
  %v164 = vpop.permute.xlu0 %163
  %v166 = vlaneseq
  %v167 = vshrl.u32 %v166, 7
  %v168 = vsub.s32 0, %v167
  %v169 = vrot.slane %v25, %v168
  %v170 = vmul.f32 %v116, %v169
  %v171 = vmul.f32 %v120, %v169
  %v172 = vmul.f32 %v124, %v169
  %v173 = vmul.f32 %v128, %v169
  %v174 = vmul.f32 %v132, %v169
  %v175 = vmul.f32 %v136, %v169
  %v176 = vmul.f32 %v140, %v169
  %v177 = vmul.f32 %v144, %v169
  %v178 = vmul.f32 %v148, %v169
  %v179 = vmul.f32 %v152, %v169
  %v180 = vmul.f32 %v156, %v169
  %v181 = vmul.f32 %v160, %v169
  %v182 = vmul.f32 %v164, %v169
  %v183 = vadd.f32 %v101, %v170
  %v184 = vadd.f32 %v102, %v171
  %v185 = vadd.f32 %v103, %v172
  %v186 = vadd.f32 %v104, %v173
  %v187 = vadd.f32 %v105, %v174
  %v188 = vadd.f32 %v106, %v175
  %v189 = vadd.f32 %v107, %v176
  %v190 = vadd.f32 %v108, %v177
  %v191 = vadd.f32 %v109, %v178
  %v192 = vadd.f32 %v110, %v179
  %v193 = vadd.f32 %v111, %v180
  %v194 = vadd.f32 %v112, %v181
  %v195 = vadd.f32 %v113, %v182
  %v196 = vlaneseq
  %v197 = vshrl.u32 %v196, 7
  %v198 = vsub.s32 0, %v197
  %v199 = vrot.slane %v26, %v198
  %v200 = vadd.f32 %v183, %v199
  %v201 = vadd.f32 %v184, %v199
  %v202 = vadd.f32 %v185, %v199
  %v203 = vadd.f32 %v186, %v199
  %v204 = vadd.f32 %v187, %v199
  %v205 = vadd.f32 %v188, %v199
  %v206 = vadd.f32 %v189, %v199
  %v207 = vadd.f32 %v190, %v199
  %v208 = vadd.f32 %v191, %v199
  %v209 = vadd.f32 %v192, %v199
  %v210 = vadd.f32 %v193, %v199
  %v211 = vadd.f32 %v194, %v199
  %v212 = vadd.f32 %v195, %v199
  %v213 = vmax.f32 %v200, 0.0
  %v214 = vmax.f32 %v201, 0.0
  %v215 = vmax.f32 %v202, 0.0
  %v216 = vmax.f32 %v203, 0.0
  %v217 = vmax.f32 %v204, 0.0
  %v218 = vmax.f32 %v205, 0.0
  %v219 = vmax.f32 %v206, 0.0
  %v220 = vmax.f32 %v207, 0.0
  %v221 = vmax.f32 %v208, 0.0
  %v222 = vmax.f32 %v209, 0.0
  %v223 = vmax.f32 %v210, 0.0
  %v224 = vmax.f32 %v211, 0.0
  %v225 = vmax.f32 %v212, 0.0
  %v226 = vlaneseq
  %v227 = vshrl.u32 %v226, 7
  %v228 = vsub.s32 0, %v227
  %v229 = vrot.slane %v31, %v228
  %vm230 = vcmask 261120
  %v232 = vsel %vm230, %v213, 0
  %v235 = vsel %vm230, %v214, 0
  %v238 = vsel %vm230, %v215, 0
  %v241 = vsel %vm230, %v216, 0
  %v244 = vsel %vm230, %v217, 0
  %v247 = vsel %vm230, %v218, 0
  %v250 = vsel %vm230, %v219, 0
  %v253 = vsel %vm230, %v220, 0
  %v256 = vsel %vm230, %v221, 0
  %v259 = vsel %vm230, %v222, 0
  %v262 = vsel %vm230, %v223, 0
  %v265 = vsel %vm230, %v224, 0
  %v268 = vsel %vm230, %v225, 0
  %270 = vmatprep.subr.mxu0 0.0
  %271 = vmatpush1.msra.mxu0 0.0
  %272 = vmatprep.subr.mxu0 0.0
  %273 = vmatpush1.msra.mxu0 0.0
  %274 = vmatprep.subr.mxu0 0.0
  %275 = vmatpush1.msra.mxu0 0.0
  %276 = vmatprep.subr.mxu0 0.0
  %277 = vmatpush1.msra.mxu0 0.0
  %278 = vmatprep.subr.mxu0 0.0
  %279 = vmatpush1.msra.mxu0 0.0
  %280 = vmatprep.subr.mxu0 0.0
  %281 = vmatpush1.msra.mxu0 0.0
  %282 = vmatprep.subr.mxu0 0.0
  %283 = vmatpush1.msra.mxu0 0.0
  %284 = vmatprep.subr.mxu0 0.0
  %285 = vmatpush1.msra.mxu0 0.0
  %286 = vmatprep.subr.mxu0 0.0
  %287 = vmatpush1.msra.mxu0 0.0
  %288 = vmatprep.subr.mxu0 0.0
  %289 = vmatpush1.msra.mxu0 0.0
  %290 = vmatprep.subr.mxu0 0.0
  %291 = vmatpush1.msra.mxu0 0.0
  %292 = vmatprep.subr.mxu0 0.0
  %293 = vmatpush1.msra.mxu0 0.0
  %294 = vmatprep.subr.mxu0 0.0
  %295 = vmatpush1.msra.mxu0 %v30
  %296 = vmatprep.subr.mxu0 0.0
  %297 = vmatpush1.msra.mxu0 %v29
  %298 = vmatprep.subr.mxu0 0.0
  %299 = vmatpush1.msra.mxu0 %v28
  %300 = vmatprep.subr.mxu0 0.0
  %301 = vmatpush1.msra.mxu0 %v27
  %302 = vmatprep.subr.mxu0 0.0
  %303 = vmatpush2.msra.mxu0 0.0
  %304 = vmatprep.subr.mxu0 0.0
  %305 = vmatpush2.msra.mxu0 0.0
  %306 = vmatprep.subr.mxu0 0.0
  %307 = vmatpush2.msra.mxu0 0.0
  %308 = vmatprep.subr.mxu0 0.0
  %309 = vmatpush2.msra.mxu0 0.0
  %310 = vmatprep.subr.mxu0 0.0
  %311 = vmatpush2.msra.mxu0 0.0
  %312 = vmatprep.subr.mxu0 0.0
  %313 = vmatpush2.msra.mxu0 0.0
  %314 = vmatprep.subr.mxu0 0.0
  %315 = vmatpush2.msra.mxu0 0.0
  %316 = vmatprep.subr.mxu0 0.0
  %317 = vmatpush2.msra.mxu0 0.0
  %318 = vmatprep.subr.mxu0 0.0
  %319 = vmatpush2.msra.mxu0 0.0
  %320 = vmatprep.subr.mxu0 0.0
  %321 = vmatpush2.msra.mxu0 0.0
  %322 = vmatprep.subr.mxu0 0.0
  %323 = vmatpush2.msra.mxu0 0.0
  %324 = vmatprep.subr.mxu0 0.0
  %325 = vmatpush2.msra.mxu0 0.0
  %326 = vmatprep.subr.mxu0 0.0
  %327 = vmatpush2.msra.mxu0 0.0
  %328 = vmatprep.subr.mxu0 0.0
  %329 = vmatpush2.msra.mxu0 0.0
  %330 = vmatprep.subr.mxu0 0.0
  %331 = vmatpush2.msra.mxu0 0.0
  %332 = vmatprep.subr.mxu0 0.0
  %333 = vmatpush2.msra.mxu0 0.0
  %334 = vmatprep.mubr.f32.mxu0 0.0
  %335 = vmatmul.mubr.f32.gmra.mxu0 %v232
  %v336 = vpop.f32.mrf.mxu0
  %v337 = vadd.f32 %v229, %v336
  %v338 = vpop.f32.mrf.mxu0
  %339 = vmatprep.mubr.f32.mxu0 0.0
  %340 = vmatmul.mubr.f32.gmra.mxu0 %v235
  %v341 = vpop.f32.mrf.mxu0
  %v342 = vadd.f32 %v229, %v341
  %v343 = vpop.f32.mrf.mxu0
  %344 = vmatprep.mubr.f32.mxu0 0.0
  %345 = vmatmul.mubr.f32.gmra.mxu0 %v238
  %v346 = vpop.f32.mrf.mxu0
  %v347 = vadd.f32 %v229, %v346
  %v348 = vpop.f32.mrf.mxu0
  %349 = vmatprep.mubr.f32.mxu0 0.0
  %350 = vmatmul.mubr.f32.gmra.mxu0 %v241
  %v351 = vpop.f32.mrf.mxu0
  %v352 = vadd.f32 %v229, %v351
  %v353 = vpop.f32.mrf.mxu0
  %354 = vmatprep.mubr.f32.mxu0 0.0
  %355 = vmatmul.mubr.f32.gmra.mxu0 %v244
  %v356 = vpop.f32.mrf.mxu0
  %v357 = vadd.f32 %v229, %v356
  %v358 = vpop.f32.mrf.mxu0
  %359 = vmatprep.mubr.f32.mxu0 0.0
  %360 = vmatmul.mubr.f32.gmra.mxu0 %v247
  %v361 = vpop.f32.mrf.mxu0
  %v362 = vadd.f32 %v229, %v361
  %v363 = vpop.f32.mrf.mxu0
  %364 = vmatprep.mubr.f32.mxu0 0.0
  %365 = vmatmul.mubr.f32.gmra.mxu0 %v250
  %v366 = vpop.f32.mrf.mxu0
  %v367 = vadd.f32 %v229, %v366
  %v368 = vpop.f32.mrf.mxu0
  %369 = vmatprep.mubr.f32.mxu0 0.0
  %370 = vmatmul.mubr.f32.gmra.mxu0 %v253
  %v371 = vpop.f32.mrf.mxu0
  %v372 = vadd.f32 %v229, %v371
  %v373 = vpop.f32.mrf.mxu0
  %374 = vmatprep.mubr.f32.mxu0 0.0
  %375 = vmatmul.mubr.f32.gmra.mxu0 %v256
  %v376 = vpop.f32.mrf.mxu0
  %v377 = vadd.f32 %v229, %v376
  %v378 = vpop.f32.mrf.mxu0
  %379 = vmatprep.mubr.f32.mxu0 0.0
  %380 = vmatmul.mubr.f32.gmra.mxu0 %v259
  %v381 = vpop.f32.mrf.mxu0
  %v382 = vadd.f32 %v229, %v381
  %v383 = vpop.f32.mrf.mxu0
  %384 = vmatprep.mubr.f32.mxu0 0.0
  %385 = vmatmul.mubr.f32.gmra.mxu0 %v262
  %v386 = vpop.f32.mrf.mxu0
  %v387 = vadd.f32 %v229, %v386
  %v388 = vpop.f32.mrf.mxu0
  %389 = vmatprep.mubr.f32.mxu0 0.0
  %390 = vmatmul.mubr.f32.gmra.mxu0 %v265
  %v391 = vpop.f32.mrf.mxu0
  %v392 = vadd.f32 %v229, %v391
  %v393 = vpop.f32.mrf.mxu0
  %394 = vmatprep.mubr.f32.mxu0 0.0
  %395 = vmatmul.mubr.f32.gmra.mxu0 %v268
  %v396 = vpop.f32.mrf.mxu0
  %v397 = vadd.f32 %v229, %v396
  %v398 = vpop.f32.mrf.mxu0
  %399 = vdwg.mxu0
  %400 = vst.msk [vmem:[%s2] sm:$0xff] %vm230, %v337
  %401 = vst.msk [vmem:[%s2 + $0x8] sm:$0xff] %vm230, %v342
  %402 = vst.msk [vmem:[%s2 + $0x10] sm:$0xff] %vm230, %v347
  %403 = vst.msk [vmem:[%s2 + $0x18] sm:$0xff] %vm230, %v352
  %404 = vst.msk [vmem:[%s2 + $0x20] sm:$0xff] %vm230, %v357
  %405 = vst.msk [vmem:[%s2 + $0x28] sm:$0xff] %vm230, %v362
  %406 = vst.msk [vmem:[%s2 + $0x30] sm:$0xff] %vm230, %v367
  %407 = vst.msk [vmem:[%s2 + $0x38] sm:$0xff] %vm230, %v372
  %408 = vst.msk [vmem:[%s2 + $0x40] sm:$0xff] %vm230, %v377
  %409 = vst.msk [vmem:[%s2 + $0x48] sm:$0xff] %vm230, %v382
  %410 = vst.msk [vmem:[%s2 + $0x50] sm:$0xff] %vm230, %v387
  %411 = vst.msk [vmem:[%s2 + $0x58] sm:$0xff] %vm230, %v392
  %vm412 = vcmask 257024
  %413 = vst.msk [vmem:[%s2 + $0x60] sm:$0xf] %vm412, %v397
  // Predicated region
  $region10: #{distance_encoding.1} parent=0 // pred_check
    _
  $region11: #{distance_encoding.1} parent=0 // pred_check_branch
    %415 = sbr.rel (0) target = $region13
  $region12: #{distance_encoding.1} parent=0 // pred_region
    _
  $region13: #{distance_encoding.1} parent=0 // pred_fallthru
    _
  // Predicated region
  $region14: #{distance_encoding.1} parent=0 // pred_check
    _
  $region15: #{distance_encoding.1} parent=0 // pred_check_branch
    %417 = sbr.rel (0) target = $region17
  $region16: #{distance_encoding.1} parent=0 // pred_region
    _
  $region17: #{distance_encoding.1} parent=0 // pred_fallthru
    _

</llo_original>
